<compile_context>
chip_gen: v5e
topology: v5e:2x2
jax: 0.10.0
libtpu: 0.0.40
codegen_flags: <defaults>
</compile_context>

<pallas_src>
import functools

import jax
import jax.numpy as jnp
from jax import lax
from jax.experimental import pallas as pl
from jax.experimental.pallas import tpu as pltpu


LANES = 128
MAX_TILE_ROWS = 4096                 # 4096*128*4B = 2 MiB per f32 slab per step
NUM_CORES = 2                        # leading "parallel" axis (v7x megacore)
VMEM_LIMIT_BYTES = 40 * 1024 * 1024  # > 2x(5 slabs x 2 MiB); safe on v5e/v6e/v7x


def _sublane_multiple(dtype):
    # f32 -> 8 sublanes, bf16 -> 16, int8/fp8 -> 32 (sub-32-bit sublane packing).
    return max(8, 32 // jnp.dtype(dtype).itemsize)


def _prep_group(tensors):
    """Lane-dense (rows, 128) views of the 128-aligned prefix of each tensor.

    No full-size jnp.pad: the aligned prefix reshape is free, the <128-element
    tail is handled by a tiny wrapper-side sum, and only groups smaller than one
    minimal (sub, 128) tile get zero-padded (copies < 4 KiB).
    Returns (slabs, rows, n_main, sub)."""
    n = tensors[0].size
    sub = max(_sublane_multiple(t.dtype) for t in tensors)
    rows = n // LANES
    n_main = rows * LANES
    if rows == 0:
        # Whole group fits in the wrapper tail; feed zero slabs (diff == 0).
        return [jnp.zeros((sub, LANES), t.dtype) for t in tensors], sub, 0, sub
    slabs = []
    for t in tensors:
        flat = t.reshape(-1)
        if n_main != n:
            flat = flat[:n_main]      # aligned prefix; tail summed in wrapper
        slabs.append(flat.reshape(rows, LANES))
    if rows < sub:
        # Tiny group: pad up to one minimal tile so the block never has to be
        # taller than the array itself (negligible copy of < sub*128 elements).
        slabs = [jnp.pad(s, ((0, sub - rows), (0, 0))) for s in slabs]
        rows = sub
    return slabs, rows, n_main, sub


def _tiling(rows, sub):
    tr = min(MAX_TILE_ROWS, (rows // sub) * sub)  # block height (multiple of 8)
    nblk = pl.cdiv(rows, tr)                      # row-blocks in this group
    per_core = pl.cdiv(nblk, NUM_CORES)           # blocks each core owns
    return tr, nblk, per_core


def _in_index_map(per_core, nblk):
    last = nblk - 1

    def index_map(c, i):
        # Clamp so steps past this group's last block re-use it (unchanged block
        # index => the DMA is skipped); their contribution is masked to zero.
        return (jnp.minimum(c * per_core + i, last), 0)

    return index_map


def _make_kernel(tr_a, rows_a, per_core_a, nblk_a,
                 tr_b, rows_b, per_core_b, nblk_b, inner_steps):
    # Static flags: only emit the mask when a partial / duplicated block exists.
    mask_a = (nblk_a * tr_a != rows_a or NUM_CORES * per_core_a != nblk_a
              or inner_steps != per_core_a)
    mask_b = (nblk_b * tr_b != rows_b or NUM_CORES * per_core_b != nblk_b
              or inner_steps != per_core_b)

    def kernel(so_ref, to_ref, lb_ref, sf_ref, tf_ref,
               soft_ref, label_ref, feat_ref):
        c = pl.program_id(0)   # core split  ("parallel")
        i = pl.program_id(1)   # reduction   ("arbitrary")

        @pl.when(i == 0)
        def _init():
            soft_ref[...] = jnp.zeros_like(soft_ref)
            label_ref[...] = jnp.zeros_like(label_ref)
            feat_ref[...] = jnp.zeros_like(feat_ref)

        def valid_rows(tr, rows, per_core):
            # Rows of this step's tile that truly belong to this (core, step).
            blk = c * per_core + i                 # un-clamped block id
            row_ids = blk * tr + lax.broadcasted_iota(jnp.int32, (tr, LANES), 0)
            limit = jnp.where(i < per_core, rows, 0)   # kills cross-core dups
            return row_ids < limit

        def fold(sq, tr):
            # (tr,128) -> (8,128): layout-preserving reshape + leading-axis sum
            # (pure VALU vreg adds, no XLU); the resident accumulator is 1 vreg.
            return sq.reshape(tr // 8, 8, LANES).sum(axis=0)

        # ---- group A: student_out vs teacher_out and vs labels ----
        so = so_ref[...].astype(jnp.float32)
        to = to_ref[...].astype(jnp.float32)
        lb = lb_ref[...].astype(jnp.float32)
        d_soft = so - to
        d_label = so - lb
        sq_soft = d_soft * d_soft          # square(sqrt(dr^2+di^2)) == dr^2+di^2
        sq_label = d_label * d_label
        if mask_a:
            va = valid_rows(tr_a, rows_a, per_core_a)
            sq_soft = jnp.where(va, sq_soft, 0.0)
            sq_label = jnp.where(va, sq_label, 0.0)
        soft_ref[...] += fold(sq_soft, tr_a)
        label_ref[...] += fold(sq_label, tr_a)

        # ---- group B: student_feat vs teacher_feat ----
        sf = sf_ref[...].astype(jnp.float32)
        tf = tf_ref[...].astype(jnp.float32)
        d_feat = sf - tf
        sq_feat = d_feat * d_feat
        if mask_b:
            vb = valid_rows(tr_b, rows_b, per_core_b)
            sq_feat = jnp.where(vb, sq_feat, 0.0)
        feat_ref[...] += fold(sq_feat, tr_b)

    return kernel


def _fused_sums(student_out, teacher_out, labels, student_feat, teacher_feat):
    (so, to, lb), rows_a, n_main_a, sub_a = _prep_group(
        (student_out, teacher_out, labels))
    (sf, tf), rows_b, n_main_b, sub_b = _prep_group(
        (student_feat, teacher_feat))

    tr_a, nblk_a, per_core_a = _tiling(rows_a, sub_a)
    tr_b, nblk_b, per_core_b = _tiling(rows_b, sub_b)
    inner = max(per_core_a, per_core_b)

    spec_a = pl.BlockSpec((tr_a, LANES), _in_index_map(per_core_a, nblk_a))
    spec_b = pl.BlockSpec((tr_b, LANES), _in_index_map(per_core_b, nblk_b))
    out_spec = pl.BlockSpec((8, LANES), lambda c, i: (c, 0))
    out_sds = jax.ShapeDtypeStruct((NUM_CORES * 8, LANES), jnp.float32)

    in_bytes = sum(x.size * x.dtype.itemsize for x in (so, to, lb, sf, tf))
    cost = pl.CostEstimate(
        flops=9 * so.size + 5 * sf.size,
        transcendentals=0,
        bytes_accessed=in_bytes + 3 * NUM_CORES * 8 * LANES * 4)

    kernel = _make_kernel(tr_a, rows_a, per_core_a, nblk_a,
                          tr_b, rows_b, per_core_b, nblk_b, inner)

    soft_p, label_p, feat_p = pl.pallas_call(
        kernel,
        out_shape=(out_sds, out_sds, out_sds),
        grid_spec=pltpu.PrefetchScalarGridSpec(
            num_scalar_prefetch=0,
            grid=(NUM_CORES, inner),
            in_specs=[spec_a, spec_a, spec_a, spec_b, spec_b],
            out_specs=[out_spec, out_spec, out_spec]),
        compiler_params=pltpu.CompilerParams(
            dimension_semantics=("parallel", "arbitrary"),
            vmem_limit_bytes=VMEM_LIMIT_BYTES),
        cost_estimate=cost,
    )(so, to, lb, sf, tf)

    # Lane-dense (2*8, 128) partials: the cross-lane reduce happens here, in XLA,
    # not inside the kernel.
    return (jnp.sum(soft_p), jnp.sum(label_p), jnp.sum(feat_p)), (n_main_a,
                                                                  n_main_b)


def _tail_sum_sq(a, b, n_main):
    """Squared-diff sum of the <128-element unaligned tail (usually empty)."""
    n = a.size
    if n_main >= n:
        return jnp.zeros((), jnp.float32)
    at = a.reshape(-1)[n_main:].astype(jnp.float32)
    bt = b.reshape(-1)[n_main:].astype(jnp.float32)
    d = at - bt
    return jnp.sum(d * d)


@functools.partial(jax.jit, static_argnames=("alpha", "beta", "gamma"))
def distillation_loss(student_out, teacher_out, student_feat, teacher_feat,
                      labels, alpha=0.2, beta=0.3, gamma=0.5):
    """DistillationLoss.forward (teacher tensors treated as detached)."""
    assert student_out.shape[-1] == 2 and student_feat.shape[-1] == 2
    assert student_out.shape == teacher_out.shape == labels.shape, \
        "student_out / teacher_out / labels must have identical shapes"
    assert student_feat.shape == teacher_feat.shape, \
        "student_feat / teacher_feat must have identical shapes"
    teacher_out = lax.stop_gradient(teacher_out)
    teacher_feat = lax.stop_gradient(teacher_feat)

    (soft_sum, label_sum, feat_sum), (n_main_a, n_main_b) = _fused_sums(
        student_out, teacher_out, labels, student_feat, teacher_feat)

    soft_sum = soft_sum + _tail_sum_sq(student_out, teacher_out, n_main_a)
    label_sum = label_sum + _tail_sum_sq(student_out, labels, n_main_a)
    feat_sum = feat_sum + _tail_sum_sq(student_feat, teacher_feat, n_main_b)

    n_complex_a = student_out.size // 2    # number of complex entries
    n_complex_b = student_feat.size // 2
    soft_loss = soft_sum / jnp.float32(n_complex_a)
    feat_loss = feat_sum / jnp.float32(n_complex_b)
    label_loss = label_sum / jnp.float32(n_complex_a)
    return alpha * soft_loss + beta * feat_loss + gamma * label_loss


# --------------------------- reference / self-test ---------------------------

def _reference_complex_mse(est, lab):
    diff = est.astype(jnp.float32) - lab.astype(jnp.float32)
    return jnp.mean(jnp.square(jnp.sqrt(jnp.square(diff[..., 0]) +
                                        jnp.square(diff[..., 1]))))


def _reference_loss(so, to, sf, tf, lb, alpha=0.2, beta=0.3, gamma=0.5):
    return (alpha * _reference_complex_mse(so, to)
            + beta * _reference_complex_mse(sf, tf)
            + gamma * _reference_complex_mse(so, lb))


if __name__ == "__main__":
    key = jax.random.PRNGKey(0)
    k = jax.random.split(key, 10)

    # Case 1: lane-aligned (batch, csi_matrix, 2) / (batch, feat, 2) tensors.
    so1 = jax.random.normal(k[0], (2, 256, 2), dtype=jnp.float32)
    to1 = jax.random.normal(k[1], (2, 256, 2), dtype=jnp.float32)
    sf1 = jax.random.normal(k[2], (2, 96, 2), dtype=jnp.float32)
    tf1 = jax.random.normal(k[3], (2, 96, 2), dtype=jnp.float32)
    lb1 = jax.random.normal(k[4], (2, 256, 2), dtype=jnp.float32)
    loss1 = jax.block_until_ready(distillation_loss(so1, to1, sf1, tf1, lb1))
    ref1 = _reference_loss(so1, to1, sf1, tf1, lb1)
    assert jnp.allclose(loss1, ref1, rtol=1e-5, atol=1e-5), (loss1, ref1)

    # Case 2: unaligned sizes (exercises partial-block masking + wrapper tails).
    so2 = jax.random.normal(k[5], (3, 333, 2), dtype=jnp.float32)
    to2 = jax.random.normal(k[6], (3, 333, 2), dtype=jnp.float32)
    sf2 = jax.random.normal(k[7], (3, 50, 2), dtype=jnp.float32)
    tf2 = jax.random.normal(k[8], (3, 50, 2), dtype=jnp.float32)
    lb2 = jax.random.normal(k[9], (3, 333, 2), dtype=jnp.float32)
    loss2 = jax.block_until_ready(distillation_loss(so2, to2, sf2, tf2, lb2))
    ref2 = _reference_loss(so2, to2, sf2, tf2, lb2)
    assert jnp.allclose(loss2, ref2, rtol=1e-5, atol=1e-5), (loss2, ref2)

    print("KERNEL_OK")
</pallas_src>

<mosaic_0001>
module attributes {stable_mosaic.version = 11 : i64} {
  func.func @kernel(%arg0: i32, %arg1: i32, %arg2: memref<8x128xf32, #tpu.memory_space<vmem>>, %arg3: memref<8x128xf32, #tpu.memory_space<vmem>>, %arg4: memref<8x128xf32, #tpu.memory_space<vmem>>, %arg5: memref<8x128xf32, #tpu.memory_space<vmem>>, %arg6: memref<8x128xf32, #tpu.memory_space<vmem>>, %arg7: memref<8x128xf32, #tpu.memory_space<vmem>>, %arg8: memref<8x128xf32, #tpu.memory_space<vmem>>, %arg9: memref<8x128xf32, #tpu.memory_space<vmem>>) attributes {dimension_semantics = [#tpu.dimension_semantics<parallel>, #tpu.dimension_semantics<arbitrary>], iteration_bounds = array<i64: 2, 1>, scalar_prefetch = 0 : i64, scratch_operands = 0 : i64, tpu.core_type = #tpu.core_type<tc>, window_params = [{transform_indices = @transform_0, window_bounds = array<i64: 8, 128>}, {transform_indices = @transform_1, window_bounds = array<i64: 8, 128>}, {transform_indices = @transform_2, window_bounds = array<i64: 8, 128>}, {transform_indices = @transform_3, window_bounds = array<i64: 8, 128>}, {transform_indices = @transform_4, window_bounds = array<i64: 8, 128>}, {transform_indices = @transform_5, window_bounds = array<i64: 8, 128>}, {transform_indices = @transform_6, window_bounds = array<i64: 8, 128>}, {transform_indices = @transform_7, window_bounds = array<i64: 8, 128>}]} {
    %c0_i32 = arith.constant 0 : i32
    %0 = arith.cmpi eq, %arg1, %c0_i32 : i32
    %1 = arith.extui %0 : i1 to i32
    %c0_i32_0 = arith.constant 0 : i32
    %2 = arith.cmpi ne, %1, %c0_i32_0 : i32
    scf.if %2 {
      %cst_35 = arith.constant 0.000000e+00 : f32
      %55 = vector.broadcast %cst_35 : f32 to vector<8x128xf32>
      %c0_36 = arith.constant 0 : index
      %c0_37 = arith.constant 0 : index
      %56 = vector.load %arg7[%c0_36, %c0_37] : memref<8x128xf32, #tpu.memory_space<vmem>>, vector<8x128xf32>
      tpu.vector_store %arg7[%c0_36, %c0_37], %55 {strides = array<i32>} : memref<8x128xf32, #tpu.memory_space<vmem>>, vector<8x128xf32>,
      %cst_38 = arith.constant 0.000000e+00 : f32
      %57 = vector.broadcast %cst_38 : f32 to vector<8x128xf32>
      %c0_39 = arith.constant 0 : index
      %c0_40 = arith.constant 0 : index
      %58 = vector.load %arg8[%c0_39, %c0_40] : memref<8x128xf32, #tpu.memory_space<vmem>>, vector<8x128xf32>
      tpu.vector_store %arg8[%c0_39, %c0_40], %57 {strides = array<i32>} : memref<8x128xf32, #tpu.memory_space<vmem>>, vector<8x128xf32>,
      %cst_41 = arith.constant 0.000000e+00 : f32
      %59 = vector.broadcast %cst_41 : f32 to vector<8x128xf32>
      %c0_42 = arith.constant 0 : index
      %c0_43 = arith.constant 0 : index
      %60 = vector.load %arg9[%c0_42, %c0_43] : memref<8x128xf32, #tpu.memory_space<vmem>>, vector<8x128xf32>
      tpu.vector_store %arg9[%c0_42, %c0_43], %59 {strides = array<i32>} : memref<8x128xf32, #tpu.memory_space<vmem>>, vector<8x128xf32>,
    } else {
    }
    %c0 = arith.constant 0 : index
    %c0_1 = arith.constant 0 : index
    %3 = vector.load %arg2[%c0, %c0_1] : memref<8x128xf32, #tpu.memory_space<vmem>>, vector<8x128xf32>
    %c0_2 = arith.constant 0 : index
    %c0_3 = arith.constant 0 : index
    %4 = vector.load %arg3[%c0_2, %c0_3] : memref<8x128xf32, #tpu.memory_space<vmem>>, vector<8x128xf32>
    %c0_4 = arith.constant 0 : index
    %c0_5 = arith.constant 0 : index
    %5 = vector.load %arg4[%c0_4, %c0_5] : memref<8x128xf32, #tpu.memory_space<vmem>>, vector<8x128xf32>
    %6 = arith.subf %3, %4 : vector<8x128xf32>
    %7 = arith.subf %3, %5 : vector<8x128xf32>
    %8 = arith.mulf %6, %6 : vector<8x128xf32>
    %9 = arith.mulf %7, %7 : vector<8x128xf32>
    %c1_i32 = arith.constant 1 : i32
    %10 = arith.muli %arg0, %c1_i32 : i32
    %11 = arith.addi %10, %arg1 : i32
    %c8_i32 = arith.constant 8 : i32
    %12 = arith.muli %11, %c8_i32 : i32
    %13 = tpu.iota {dimensions = array<i32: 0>} : vector<8x128xi32>
    %14 = vector.broadcast %12 : i32 to vector<8x128xi32>
    %15 = arith.addi %14, %13 : vector<8x128xi32>
    %c1_i32_6 = arith.constant 1 : i32
    %16 = arith.cmpi slt, %arg1, %c1_i32_6 : i32
    %c8_i32_7 = arith.constant 8 : i32
    %c0_i32_8 = arith.constant 0 : i32
    %17 = arith.select %16, %c8_i32_7, %c0_i32_8 : i32
    %18 = vector.broadcast %17 : i32 to vector<8x128xi32>
    %19 = arith.cmpi slt, %15, %18 : vector<8x128xi32>
    %cst = arith.constant 0.000000e+00 : f32
    %20 = vector.broadcast %cst : f32 to vector<8x128xf32>
    %21 = arith.select %19, %8, %20 : vector<8x128xi1>, vector<8x128xf32>
    %cst_9 = arith.constant 0.000000e+00 : f32
    %22 = vector.broadcast %cst_9 : f32 to vector<8x128xf32>
    %23 = arith.select %19, %9, %22 : vector<8x128xi1>, vector<8x128xf32>
    %c0_10 = arith.constant 0 : index
    %c0_11 = arith.constant 0 : index
    %24 = vector.load %arg7[%c0_10, %c0_11] : memref<8x128xf32, #tpu.memory_space<vmem>>, vector<8x128xf32>
    %25 = vector.shape_cast %21 : vector<8x128xf32> to vector<1x8x128xf32>
    %cst_12 = arith.constant dense<0.000000e+00> : vector<8x128xf32>
    %26 = vector.multi_reduction <add>, %25, %cst_12 [0] : vector<1x8x128xf32> to vector<8x128xf32>
    %27 = arith.addf %24, %26 : vector<8x128xf32>
    %c0_13 = arith.constant 0 : index
    %c0_14 = arith.constant 0 : index
    %28 = vector.load %arg7[%c0_13, %c0_14] : memref<8x128xf32, #tpu.memory_space<vmem>>, vector<8x128xf32>
    tpu.vector_store %arg7[%c0_13, %c0_14], %27 {strides = array<i32>} : memref<8x128xf32, #tpu.memory_space<vmem>>, vector<8x128xf32>,
    %c0_15 = arith.constant 0 : index
    %c0_16 = arith.constant 0 : index
    %29 = vector.load %arg8[%c0_15, %c0_16] : memref<8x128xf32, #tpu.memory_space<vmem>>, vector<8x128xf32>
    %30 = vector.shape_cast %23 : vector<8x128xf32> to vector<1x8x128xf32>
    %cst_17 = arith.constant dense<0.000000e+00> : vector<8x128xf32>
    %31 = vector.multi_reduction <add>, %30, %cst_17 [0] : vector<1x8x128xf32> to vector<8x128xf32>
    %32 = arith.addf %29, %31 : vector<8x128xf32>
    %c0_18 = arith.constant 0 : index
    %c0_19 = arith.constant 0 : index
    %33 = vector.load %arg8[%c0_18, %c0_19] : memref<8x128xf32, #tpu.memory_space<vmem>>, vector<8x128xf32>
    tpu.vector_store %arg8[%c0_18, %c0_19], %32 {strides = array<i32>} : memref<8x128xf32, #tpu.memory_space<vmem>>, vector<8x128xf32>,
    %c0_20 = arith.constant 0 : index
    %c0_21 = arith.constant 0 : index
    %34 = vector.load %arg5[%c0_20, %c0_21] : memref<8x128xf32, #tpu.memory_space<vmem>>, vector<8x128xf32>
    %c0_22 = arith.constant 0 : index
    %c0_23 = arith.constant 0 : index
    %35 = vector.load %arg6[%c0_22, %c0_23] : memref<8x128xf32, #tpu.memory_space<vmem>>, vector<8x128xf32>
    %36 = arith.subf %34, %35 : vector<8x128xf32>
    %37 = arith.mulf %36, %36 : vector<8x128xf32>
    %c1_i32_24 = arith.constant 1 : i32
    %38 = arith.muli %arg0, %c1_i32_24 : i32
    %39 = arith.addi %38, %arg1 : i32
    %c8_i32_25 = arith.constant 8 : i32
    %40 = arith.muli %39, %c8_i32_25 : i32
    %41 = tpu.iota {dimensions = array<i32: 0>} : vector<8x128xi32>
    %42 = vector.broadcast %40 : i32 to vector<8x128xi32>
    %43 = arith.addi %42, %41 : vector<8x128xi32>
    %c1_i32_26 = arith.constant 1 : i32
    %44 = arith.cmpi slt, %arg1, %c1_i32_26 : i32
    %c8_i32_27 = arith.constant 8 : i32
    %c0_i32_28 = arith.constant 0 : i32
    %45 = arith.select %44, %c8_i32_27, %c0_i32_28 : i32
    %46 = vector.broadcast %45 : i32 to vector<8x128xi32>
    %47 = arith.cmpi slt, %43, %46 : vector<8x128xi32>
    %cst_29 = arith.constant 0.000000e+00 : f32
    %48 = vector.broadcast %cst_29 : f32 to vector<8x128xf32>
    %49 = arith.select %47, %37, %48 : vector<8x128xi1>, vector<8x128xf32>
    %c0_30 = arith.constant 0 : index
    %c0_31 = arith.constant 0 : index
    %50 = vector.load %arg9[%c0_30, %c0_31] : memref<8x128xf32, #tpu.memory_space<vmem>>, vector<8x128xf32>
    %51 = vector.shape_cast %49 : vector<8x128xf32> to vector<1x8x128xf32>
    %cst_32 = arith.constant dense<0.000000e+00> : vector<8x128xf32>
    %52 = vector.multi_reduction <add>, %51, %cst_32 [0] : vector<1x8x128xf32> to vector<8x128xf32>
    %53 = arith.addf %50, %52 : vector<8x128xf32>
    %c0_33 = arith.constant 0 : index
    %c0_34 = arith.constant 0 : index
    %54 = vector.load %arg9[%c0_33, %c0_34] : memref<8x128xf32, #tpu.memory_space<vmem>>, vector<8x128xf32>
    tpu.vector_store %arg9[%c0_33, %c0_34], %53 {strides = array<i32>} : memref<8x128xf32, #tpu.memory_space<vmem>>, vector<8x128xf32>,
    return
  }
  func.func @transform_0(%arg0: i32, %arg1: i32) -> (i32, i32) {
    %c1_i32 = arith.constant 1 : i32
    %0 = arith.muli %arg0, %c1_i32 : i32
    %1 = arith.addi %0, %arg1 : i32
    %c0_i32 = arith.constant 0 : i32
    %2 = arith.minsi %1, %c0_i32 : i32
    %c0_i32_0 = arith.constant 0 : i32
    %c0_i32_1 = arith.constant 0 : i32
    return %2, %c0_i32_0 : i32, i32
  }
  func.func @transform_1(%arg0: i32, %arg1: i32) -> (i32, i32) {
    %c1_i32 = arith.constant 1 : i32
    %0 = arith.muli %arg0, %c1_i32 : i32
    %1 = arith.addi %0, %arg1 : i32
    %c0_i32 = arith.constant 0 : i32
    %2 = arith.minsi %1, %c0_i32 : i32
    %c0_i32_0 = arith.constant 0 : i32
    %c0_i32_1 = arith.constant 0 : i32
    return %2, %c0_i32_0 : i32, i32
  }
  func.func @transform_2(%arg0: i32, %arg1: i32) -> (i32, i32) {
    %c1_i32 = arith.constant 1 : i32
    %0 = arith.muli %arg0, %c1_i32 : i32
    %1 = arith.addi %0, %arg1 : i32
    %c0_i32 = arith.constant 0 : i32
    %2 = arith.minsi %1, %c0_i32 : i32
    %c0_i32_0 = arith.constant 0 : i32
    %c0_i32_1 = arith.constant 0 : i32
    return %2, %c0_i32_0 : i32, i32
  }
  func.func @transform_3(%arg0: i32, %arg1: i32) -> (i32, i32) {
    %c1_i32 = arith.constant 1 : i32
    %0 = arith.muli %arg0, %c1_i32 : i32
    %1 = arith.addi %0, %arg1 : i32
    %c0_i32 = arith.constant 0 : i32
    %2 = arith.minsi %1, %c0_i32 : i32
    %c0_i32_0 = arith.constant 0 : i32
    %c0_i32_1 = arith.constant 0 : i32
    return %2, %c0_i32_0 : i32, i32
  }
  func.func @transform_4(%arg0: i32, %arg1: i32) -> (i32, i32) {
    %c1_i32 = arith.constant 1 : i32
    %0 = arith.muli %arg0, %c1_i32 : i32
    %1 = arith.addi %0, %arg1 : i32
    %c0_i32 = arith.constant 0 : i32
    %2 = arith.minsi %1, %c0_i32 : i32
    %c0_i32_0 = arith.constant 0 : i32
    %c0_i32_1 = arith.constant 0 : i32
    return %2, %c0_i32_0 : i32, i32
  }
  func.func @transform_5(%arg0: i32, %arg1: i32) -> (i32, i32) {
    %c0_i32 = arith.constant 0 : i32
    %c0_i32_0 = arith.constant 0 : i32
    return %arg0, %c0_i32 : i32, i32
  }
  func.func @transform_6(%arg0: i32, %arg1: i32) -> (i32, i32) {
    %c0_i32 = arith.constant 0 : i32
    %c0_i32_0 = arith.constant 0 : i32
    return %arg0, %c0_i32 : i32, i32
  }
  func.func @transform_7(%arg0: i32, %arg1: i32) -> (i32, i32) {
    %c0_i32 = arith.constant 0 : i32
    %c0_i32_0 = arith.constant 0 : i32
    return %arg0, %c0_i32 : i32, i32
  }
}

</mosaic_0001>

<llo_original>
// kernel: distillation_loss.1
$region0: #{distillation_loss.1}
  #allocation0 [shape = 'u32[]', space=smem, size = 0x4, offset = 0x4, fixed_abs, tag = 'smem constant byte address 0x4 - core index']
  #allocation1 [shape = 'u32[72,128]{1,0:T(1,128)}', space=vmem, size = 0x9000, scoped, tag = 'internal scratch']
  %s0 = inlined_call_operand.vmem [shape: f32[8,128], index: 0, kind: input, shape index: {}]
  %s1 = inlined_call_operand.vmem [shape: f32[8,128], index: 1, kind: input, shape index: {}]
  %s2 = inlined_call_operand.vmem [shape: f32[8,128], index: 2, kind: input, shape index: {}]
  %s3 = inlined_call_operand.vmem [shape: f32[8,128], index: 3, kind: input, shape index: {}]
  %s4 = inlined_call_operand.vmem [shape: f32[8,128], index: 4, kind: input, shape index: {}]
  %s5 = inlined_call_operand.vmem [shape: f32[16,128], index: 5, kind: output, shape index: {0}]
  %s6 = inlined_call_operand.vmem [shape: f32[16,128], index: 6, kind: output, shape index: {1}]
  %s7 = inlined_call_operand.vmem [shape: f32[16,128], index: 7, kind: output, shape index: {2}]
  %8 = xla_tuple %s5, %s6, %s7
  %s9 = sld [smem:[#allocation0]]
  $region73: #{distillation_loss.1} parent=0
    _
  %s11 = ssub.s32 1, %s9
  %s12 = scalar_select 0, %s11, %s9
  loop: start=0, step=1, limit=4
  $region2: #{distillation_loss.1} parent=0 // loop_pre_header
    _
  $region3: #{distillation_loss.1} parent=0 // loop_header
    %s14 = sphi 0, %s18
    %p15 = scmp.ge.s32.totalorder %s14, 4
    %s21 = sphi 0, %s33
    %s22 = sphi 0, %s29
    %s23 = sphi 0, %s21
    %s24 = sphi 0, %s22
    %s25 = sphi 0, %s23
    %s26 = sphi 0, %s24
    %s42 = sphi 0, %s44
    %s45 = sphi 0, %s42
    %s46 = sphi 0, %s45
    %s62 = sphi 0, %s46
    %s74 = sphi 0, %s76
    %s77 = sphi 0, %s74
    %s78 = sphi 0, %s77
    %s94 = sphi 0, %s78
    %s106 = sphi 0, %s108
    %s109 = sphi 0, %s106
    %s110 = sphi 0, %s109
    %s126 = sphi 0, %s110
    %s138 = sphi 0, %s140
    %s141 = sphi 0, %s138
    %s142 = sphi 0, %s141
    %s158 = sphi 0, %s142
    %s170 = sphi 0, %s172
    %s173 = sphi 0, %s170
    %s174 = sphi 0, %s173
    %s190 = sphi 0, %s174
    %s196 = sphi 0, %s198
    %s199 = sphi 0, %s196
    %s200 = sphi 0, %s199
    %s216 = sphi 0, %s200
    %s222 = sphi 0, %s224
    %s225 = sphi 0, %s222
    %s226 = sphi 0, %s225
    %s242 = sphi 0, %s226
    %s248 = sphi 0, %s250
    %s251 = sphi 0, %s248
    %s252 = sphi 0, %s251
    %s268 = sphi 0, %s252
  $region4: #{distillation_loss.1} parent=0 // loop_header_branch
    %17 = sbr.rel (%p15) target = $region8
  $region5: #{distillation_loss.1} parent=0 // loop_body
    %s19 = ssub.s32 %s14, 1
    %s20 = ssub.s32 %s14, 2
    %s27 = sadd.s32 1, %s22
    %p28 = scmp.ge.s32.totalorder %s27, 1
    %s29 = scalar_select %p28, 0, %s27
    %s30 = sadd.s32 1, %s21
    %s31 = scalar_select %p28, %s30, %s21
    %p32 = scmp.ge.s32.totalorder %s31, 2
    %s33 = scalar_select %p32, 0, %s31
    %s34 = sadd.s32 %s21, %s22
    %p35 = scmp.lt.s32.totalorder %s34, 0
    %s36 = scalar_select %p35, %s34, 0
    %s37 = sadd.s32 %s33, %s29
    %p38 = scmp.lt.s32.totalorder %s37, 0
    %s39 = scalar_select %p38, %s37, 0
    %s40 = ssub.s32 %s36, %s39
    %p41 = scmp.eq.s32.totalorder %s40, 0
    %s43 = sadd.s32 %s42, 1
    %s44 = scalar_select %p41, %s42, %s43
    %p47 = pneg %p41
    %p48 = scmp.eq.s32.totalorder %s14, 1
    %p49 = por %p47, %p48
    %p50 = scmp.ne.s32.totalorder %s42, %s45
    %p51 = scmp.eq.s32.totalorder %s14, 0
    %p52 = por %p50, %p51
    %p53 = scmp.ne.s32.totalorder %s42, %s45
    %p54 = scmp.eq.s32.totalorder %s19, 1
    %p55 = por %p53, %p54
    %p56 = scmp.ne.s32.totalorder %s45, %s46
    %p57 = scmp.eq.s32.totalorder %s19, 0
    %p58 = por %p56, %p57
    %p59 = scmp.ne.s32.totalorder %s45, %s46
    %p60 = scmp.eq.s32.totalorder %s20, 1
    %p61 = por %p59, %p60
    %p63 = scmp.ne.s32.totalorder %s46, %s62
    %p64 = scmp.eq.s32.totalorder %s20, 0
    %p65 = por %p63, %p64
    %s66 = sadd.s32 %s21, %s22
    %p67 = scmp.lt.s32.totalorder %s66, 0
    %s68 = scalar_select %p67, %s66, 0
    %s69 = sadd.s32 %s33, %s29
    %p70 = scmp.lt.s32.totalorder %s69, 0
    %s71 = scalar_select %p70, %s69, 0
    %s72 = ssub.s32 %s68, %s71
    %p73 = scmp.eq.s32.totalorder %s72, 0
    %s75 = sadd.s32 %s74, 1
    %s76 = scalar_select %p73, %s74, %s75
    %p79 = pneg %p73
    %p80 = scmp.eq.s32.totalorder %s14, 1
    %p81 = por %p79, %p80
    %p82 = scmp.ne.s32.totalorder %s74, %s77
    %p83 = scmp.eq.s32.totalorder %s14, 0
    %p84 = por %p82, %p83
    %p85 = scmp.ne.s32.totalorder %s74, %s77
    %p86 = scmp.eq.s32.totalorder %s19, 1
    %p87 = por %p85, %p86
    %p88 = scmp.ne.s32.totalorder %s77, %s78
    %p89 = scmp.eq.s32.totalorder %s19, 0
    %p90 = por %p88, %p89
    %p91 = scmp.ne.s32.totalorder %s77, %s78
    %p92 = scmp.eq.s32.totalorder %s20, 1
    %p93 = por %p91, %p92
    %p95 = scmp.ne.s32.totalorder %s78, %s94
    %p96 = scmp.eq.s32.totalorder %s20, 0
    %p97 = por %p95, %p96
    %s98 = sadd.s32 %s21, %s22
    %p99 = scmp.lt.s32.totalorder %s98, 0
    %s100 = scalar_select %p99, %s98, 0
    %s101 = sadd.s32 %s33, %s29
    %p102 = scmp.lt.s32.totalorder %s101, 0
    %s103 = scalar_select %p102, %s101, 0
    %s104 = ssub.s32 %s100, %s103
    %p105 = scmp.eq.s32.totalorder %s104, 0
    %s107 = sadd.s32 %s106, 1
    %s108 = scalar_select %p105, %s106, %s107
    %p111 = pneg %p105
    %p112 = scmp.eq.s32.totalorder %s14, 1
    %p113 = por %p111, %p112
    %p114 = scmp.ne.s32.totalorder %s106, %s109
    %p115 = scmp.eq.s32.totalorder %s14, 0
    %p116 = por %p114, %p115
    %p117 = scmp.ne.s32.totalorder %s106, %s109
    %p118 = scmp.eq.s32.totalorder %s19, 1
    %p119 = por %p117, %p118
    %p120 = scmp.ne.s32.totalorder %s109, %s110
    %p121 = scmp.eq.s32.totalorder %s19, 0
    %p122 = por %p120, %p121
    %p123 = scmp.ne.s32.totalorder %s109, %s110
    %p124 = scmp.eq.s32.totalorder %s20, 1
    %p125 = por %p123, %p124
    %p127 = scmp.ne.s32.totalorder %s110, %s126
    %p128 = scmp.eq.s32.totalorder %s20, 0
    %p129 = por %p127, %p128
    %s130 = sadd.s32 %s21, %s22
    %p131 = scmp.lt.s32.totalorder %s130, 0
    %s132 = scalar_select %p131, %s130, 0
    %s133 = sadd.s32 %s33, %s29
    %p134 = scmp.lt.s32.totalorder %s133, 0
    %s135 = scalar_select %p134, %s133, 0
    %s136 = ssub.s32 %s132, %s135
    %p137 = scmp.eq.s32.totalorder %s136, 0
    %s139 = sadd.s32 %s138, 1
    %s140 = scalar_select %p137, %s138, %s139
    %p143 = pneg %p137
    %p144 = scmp.eq.s32.totalorder %s14, 1
    %p145 = por %p143, %p144
    %p146 = scmp.ne.s32.totalorder %s138, %s141
    %p147 = scmp.eq.s32.totalorder %s14, 0
    %p148 = por %p146, %p147
    %p149 = scmp.ne.s32.totalorder %s138, %s141
    %p150 = scmp.eq.s32.totalorder %s19, 1
    %p151 = por %p149, %p150
    %p152 = scmp.ne.s32.totalorder %s141, %s142
    %p153 = scmp.eq.s32.totalorder %s19, 0
    %p154 = por %p152, %p153
    %p155 = scmp.ne.s32.totalorder %s141, %s142
    %p156 = scmp.eq.s32.totalorder %s20, 1
    %p157 = por %p155, %p156
    %p159 = scmp.ne.s32.totalorder %s142, %s158
    %p160 = scmp.eq.s32.totalorder %s20, 0
    %p161 = por %p159, %p160
    %s162 = sadd.s32 %s21, %s22
    %p163 = scmp.lt.s32.totalorder %s162, 0
    %s164 = scalar_select %p163, %s162, 0
    %s165 = sadd.s32 %s33, %s29
    %p166 = scmp.lt.s32.totalorder %s165, 0
    %s167 = scalar_select %p166, %s165, 0
    %s168 = ssub.s32 %s164, %s167
    %p169 = scmp.eq.s32.totalorder %s168, 0
    %s171 = sadd.s32 %s170, 1
    %s172 = scalar_select %p169, %s170, %s171
    %p175 = pneg %p169
    %p176 = scmp.eq.s32.totalorder %s14, 1
    %p177 = por %p175, %p176
    %p178 = scmp.ne.s32.totalorder %s170, %s173
    %p179 = scmp.eq.s32.totalorder %s14, 0
    %p180 = por %p178, %p179
    %p181 = scmp.ne.s32.totalorder %s170, %s173
    %p182 = scmp.eq.s32.totalorder %s19, 1
    %p183 = por %p181, %p182
    %p184 = scmp.ne.s32.totalorder %s173, %s174
    %p185 = scmp.eq.s32.totalorder %s19, 0
    %p186 = por %p184, %p185
    %p187 = scmp.ne.s32.totalorder %s173, %s174
    %p188 = scmp.eq.s32.totalorder %s20, 1
    %p189 = por %p187, %p188
    %p191 = scmp.ne.s32.totalorder %s174, %s190
    %p192 = scmp.eq.s32.totalorder %s20, 0
    %p193 = por %p191, %p192
    %s194 = ssub.s32 %s21, %s33
    %p195 = scmp.eq.s32.totalorder %s194, 0
    %s197 = sadd.s32 %s196, 1
    %s198 = scalar_select %p195, %s196, %s197
    %p201 = pneg %p195
    %p202 = scmp.eq.s32.totalorder %s14, 1
    %p203 = por %p201, %p202
    %p204 = scmp.ne.s32.totalorder %s196, %s199
    %p205 = scmp.eq.s32.totalorder %s14, 0
    %p206 = por %p204, %p205
    %p207 = scmp.ne.s32.totalorder %s196, %s199
    %p208 = scmp.eq.s32.totalorder %s19, 1
    %p209 = por %p207, %p208
    %p210 = scmp.ne.s32.totalorder %s199, %s200
    %p211 = scmp.eq.s32.totalorder %s19, 0
    %p212 = por %p210, %p211
    %p213 = scmp.ne.s32.totalorder %s199, %s200
    %p214 = scmp.eq.s32.totalorder %s20, 1
    %p215 = por %p213, %p214
    %p217 = scmp.ne.s32.totalorder %s200, %s216
    %p218 = scmp.eq.s32.totalorder %s20, 0
    %p219 = por %p217, %p218
    %s220 = ssub.s32 %s21, %s33
    %p221 = scmp.eq.s32.totalorder %s220, 0
    %s223 = sadd.s32 %s222, 1
    %s224 = scalar_select %p221, %s222, %s223
    %p227 = pneg %p221
    %p228 = scmp.eq.s32.totalorder %s14, 1
    %p229 = por %p227, %p228
    %p230 = scmp.ne.s32.totalorder %s222, %s225
    %p231 = scmp.eq.s32.totalorder %s14, 0
    %p232 = por %p230, %p231
    %p233 = scmp.ne.s32.totalorder %s222, %s225
    %p234 = scmp.eq.s32.totalorder %s19, 1
    %p235 = por %p233, %p234
    %p236 = scmp.ne.s32.totalorder %s225, %s226
    %p237 = scmp.eq.s32.totalorder %s19, 0
    %p238 = por %p236, %p237
    %p239 = scmp.ne.s32.totalorder %s225, %s226
    %p240 = scmp.eq.s32.totalorder %s20, 1
    %p241 = por %p239, %p240
    %p243 = scmp.ne.s32.totalorder %s226, %s242
    %p244 = scmp.eq.s32.totalorder %s20, 0
    %p245 = por %p243, %p244
    %s246 = ssub.s32 %s21, %s33
    %p247 = scmp.eq.s32.totalorder %s246, 0
    %s249 = sadd.s32 %s248, 1
    %s250 = scalar_select %p247, %s248, %s249
    %p253 = pneg %p247
    %p254 = scmp.eq.s32.totalorder %s14, 1
    %p255 = por %p253, %p254
    %p256 = scmp.ne.s32.totalorder %s248, %s251
    %p257 = scmp.eq.s32.totalorder %s14, 0
    %p258 = por %p256, %p257
    %p259 = scmp.ne.s32.totalorder %s248, %s251
    %p260 = scmp.eq.s32.totalorder %s19, 1
    %p261 = por %p259, %p260
    %p262 = scmp.ne.s32.totalorder %s251, %s252
    %p263 = scmp.eq.s32.totalorder %s19, 0
    %p264 = por %p262, %p263
    %p265 = scmp.ne.s32.totalorder %s251, %s252
    %p266 = scmp.eq.s32.totalorder %s20, 1
    %p267 = por %p265, %p266
    %p269 = scmp.ne.s32.totalorder %s252, %s268
    %p270 = scmp.eq.s32.totalorder %s20, 0
    %p271 = por %p269, %p270
    %p272 = scmp.le.s32.totalorder 1, %s14
    %p273 = scmp.lt.s32.totalorder %s14, 3
    %p274 = pnand %p272, %p273
    %p275 = pneg %p274
    // Predicated region
    $region9: #{distillation_loss.1} parent=5 // pred_check
      _
    $region10: #{distillation_loss.1} parent=5 // pred_check_branch
      %277 = sbr.rel (%p274) target = $region12
    $region11: #{distillation_loss.1} parent=5 // pred_region
      %s278 = ssub.s32 %s14, 1
    $region12: #{distillation_loss.1} parent=5 // pred_fallthru
      _
    %p279 = scmp.lt.s32.totalorder %s14, 2
    // Predicated region
    $region13: #{distillation_loss.1} parent=5 // pred_check
      %p280 = pneg %p279
    $region14: #{distillation_loss.1} parent=5 // pred_check_branch
      %282 = sbr.rel (%p280) target = $region16
    $region15: #{distillation_loss.1} parent=5 // pred_region
      // Predicated region
      $region17: #{distillation_loss.1} parent=15 // pred_check
        %p283 = pneg %p52
      $region18: #{distillation_loss.1} parent=15 // pred_check_branch
        %285 = sbr.rel (%p283) target = $region20
      $region19: #{distillation_loss.1} parent=15 // pred_region
        %s286 = sadd.s32 %s21, %s22
        %p287 = scmp.lt.s32.totalorder %s286, 0
        %s288 = scalar_select %p287, %s286, 0
        %p289 = scmp.lt.s32.totalorder %s288, 0
        %s290 = scalar_select %p289, %s288, 0
        %s291 = smul.addr %s290, 8
        %s292 = scalar_lea.vmem %s0, %s291
        %s293 = sadd.s32 %s21, %s22
        %p294 = scmp.lt.s32.totalorder %s293, 0
        %s295 = scalar_select %p294, %s293, 0
      $region20: #{distillation_loss.1} parent=15 // pred_fallthru
        _
      // Predicated region
      $region21: #{distillation_loss.1} parent=15 // pred_check
        %p296 = pneg %p84
      $region22: #{distillation_loss.1} parent=15 // pred_check_branch
        %298 = sbr.rel (%p296) target = $region24
      $region23: #{distillation_loss.1} parent=15 // pred_region
        %s299 = sadd.s32 %s21, %s22
        %p300 = scmp.lt.s32.totalorder %s299, 0
        %s301 = scalar_select %p300, %s299, 0
        %p302 = scmp.lt.s32.totalorder %s301, 0
        %s303 = scalar_select %p302, %s301, 0
        %s304 = smul.addr %s303, 8
        %s305 = scalar_lea.vmem %s1, %s304
        %s306 = sadd.s32 %s21, %s22
        %p307 = scmp.lt.s32.totalorder %s306, 0
        %s308 = scalar_select %p307, %s306, 0
      $region24: #{distillation_loss.1} parent=15 // pred_fallthru
        _
      // Predicated region
      $region25: #{distillation_loss.1} parent=15 // pred_check
        %p309 = pneg %p116
      $region26: #{distillation_loss.1} parent=15 // pred_check_branch
        %311 = sbr.rel (%p309) target = $region28
      $region27: #{distillation_loss.1} parent=15 // pred_region
        %s312 = sadd.s32 %s21, %s22
        %p313 = scmp.lt.s32.totalorder %s312, 0
        %s314 = scalar_select %p313, %s312, 0
        %p315 = scmp.lt.s32.totalorder %s314, 0
        %s316 = scalar_select %p315, %s314, 0
        %s317 = smul.addr %s316, 8
        %s318 = scalar_lea.vmem %s2, %s317
        %s319 = sadd.s32 %s21, %s22
        %p320 = scmp.lt.s32.totalorder %s319, 0
        %s321 = scalar_select %p320, %s319, 0
      $region28: #{distillation_loss.1} parent=15 // pred_fallthru
        _
      // Predicated region
      $region29: #{distillation_loss.1} parent=15 // pred_check
        %p322 = pneg %p148
      $region30: #{distillation_loss.1} parent=15 // pred_check_branch
        %324 = sbr.rel (%p322) target = $region32
      $region31: #{distillation_loss.1} parent=15 // pred_region
        %s325 = sadd.s32 %s21, %s22
        %p326 = scmp.lt.s32.totalorder %s325, 0
        %s327 = scalar_select %p326, %s325, 0
        %p328 = scmp.lt.s32.totalorder %s327, 0
        %s329 = scalar_select %p328, %s327, 0
        %s330 = smul.addr %s329, 8
        %s331 = scalar_lea.vmem %s3, %s330
        %s332 = sadd.s32 %s21, %s22
        %p333 = scmp.lt.s32.totalorder %s332, 0
        %s334 = scalar_select %p333, %s332, 0
      $region32: #{distillation_loss.1} parent=15 // pred_fallthru
        _
      // Predicated region
      $region33: #{distillation_loss.1} parent=15 // pred_check
        %p335 = pneg %p180
      $region34: #{distillation_loss.1} parent=15 // pred_check_branch
        %337 = sbr.rel (%p335) target = $region36
      $region35: #{distillation_loss.1} parent=15 // pred_region
        %s338 = sadd.s32 %s21, %s22
        %p339 = scmp.lt.s32.totalorder %s338, 0
        %s340 = scalar_select %p339, %s338, 0
        %p341 = scmp.lt.s32.totalorder %s340, 0
        %s342 = scalar_select %p341, %s340, 0
        %s343 = smul.addr %s342, 8
        %s344 = scalar_lea.vmem %s4, %s343
        %s345 = sadd.s32 %s21, %s22
        %p346 = scmp.lt.s32.totalorder %s345, 0
        %s347 = scalar_select %p346, %s345, 0
      $region36: #{distillation_loss.1} parent=15 // pred_fallthru
        _
    $region16: #{distillation_loss.1} parent=5 // pred_fallthru
      _
    %p348 = scmp.le.s32.totalorder 1, %s14
    %p349 = scmp.lt.s32.totalorder %s14, 3
    %p350 = pnand %p348, %p349
    %p351 = pneg %p350
    // Predicated region
    $region37: #{distillation_loss.1} parent=5 // pred_check
      _
    $region38: #{distillation_loss.1} parent=5 // pred_check_branch
      %353 = sbr.rel (%p350) target = $region40
    $region39: #{distillation_loss.1} parent=5 // pred_region
      %s354 = ssub.s32 %s14, 1
      %s355 = sadd.s32 %s23, %s24
      %p356 = scmp.lt.s32.totalorder %s355, 0
      %s357 = scalar_select %p356, %s355, 0
      %p358 = scmp.lt.s32.totalorder %s357, 0
      %s359 = scalar_select %p358, %s357, 0
      %s360 = smul.addr %s359, 8
      %s361 = scalar_lea.vmem %s0, %s360
      %p362 = pneg %p58
      %p363 = pneg %p55
      %s364 = sadd.s32 %s23, %s24
      %p365 = scmp.lt.s32.totalorder %s364, 0
      %s366 = scalar_select %p365, %s364, 0
      %p367 = scmp.lt.s32.totalorder %s366, 0
      %s368 = scalar_select %p367, %s366, 0
      %s369 = smul.addr %s368, 8
      %s370 = scalar_lea.vmem %s1, %s369
      %p371 = pneg %p90
      %p372 = pneg %p87
      %s373 = sadd.s32 %s23, %s24
      %p374 = scmp.lt.s32.totalorder %s373, 0
      %s375 = scalar_select %p374, %s373, 0
      %p376 = scmp.lt.s32.totalorder %s375, 0
      %s377 = scalar_select %p376, %s375, 0
      %s378 = smul.addr %s377, 8
      %s379 = scalar_lea.vmem %s2, %s378
      %p380 = pneg %p122
      %p381 = pneg %p119
      %s382 = sadd.s32 %s23, %s24
      %p383 = scmp.lt.s32.totalorder %s382, 0
      %s384 = scalar_select %p383, %s382, 0
      %p385 = scmp.lt.s32.totalorder %s384, 0
      %s386 = scalar_select %p385, %s384, 0
      %s387 = smul.addr %s386, 8
      %s388 = scalar_lea.vmem %s3, %s387
      %p389 = pneg %p154
      %p390 = pneg %p151
      %s391 = sadd.s32 %s23, %s24
      %p392 = scmp.lt.s32.totalorder %s391, 0
      %s393 = scalar_select %p392, %s391, 0
      %p394 = scmp.lt.s32.totalorder %s393, 0
      %s395 = scalar_select %p394, %s393, 0
      %s396 = smul.addr %s395, 8
      %s397 = scalar_lea.vmem %s4, %s396
      %p398 = pneg %p186
      %p399 = pneg %p183
      %p400 = pneg %p212
      %p401 = pneg %p209
      %p402 = scmp.lt.s32.totalorder %s23, 1
      %s403 = scalar_select %p402, %s23, 1
      %s404 = smul.addr %s403, 8
      %s405 = scalar_lea.vmem %s5, %s404
      %p406 = pneg %p238
      %p407 = pneg %p235
      %p408 = scmp.lt.s32.totalorder %s23, 1
      %s409 = scalar_select %p408, %s23, 1
      %s410 = smul.addr %s409, 8
      %s411 = scalar_lea.vmem %s6, %s410
      %p412 = pneg %p264
      %p413 = pneg %p261
      %p414 = scmp.lt.s32.totalorder %s23, 1
      %s415 = scalar_select %p414, %s23, 1
      %s416 = smul.addr %s415, 8
      %s417 = scalar_lea.vmem %s7, %s416
      %s418 = sadd.s32 %s23, %s24
      %p419 = scmp.lt.s32.totalorder %s418, 0
      %s420 = scalar_select %p419, %s418, 0
      %p421 = scmp.lt.s32.totalorder %s420, 0
      %s422 = scalar_select %p421, %s420, 0
      %s423 = smul.addr %s422, 8
      %s424 = scalar_lea.vmem %s0, %s423
      %s425 = sadd.s32 %s23, %s24
      %p426 = scmp.lt.s32.totalorder %s425, 0
      %s427 = scalar_select %p426, %s425, 0
      %s428 = sadd.s32 %s23, %s24
      %p429 = scmp.lt.s32.totalorder %s428, 0
      %s430 = scalar_select %p429, %s428, 0
      %p431 = scmp.lt.s32.totalorder %s430, 0
      %s432 = scalar_select %p431, %s430, 0
      %s433 = smul.addr %s432, 8
      %s434 = scalar_lea.vmem %s1, %s433
      %s435 = sadd.s32 %s23, %s24
      %p436 = scmp.lt.s32.totalorder %s435, 0
      %s437 = scalar_select %p436, %s435, 0
      %s438 = sadd.s32 %s23, %s24
      %p439 = scmp.lt.s32.totalorder %s438, 0
      %s440 = scalar_select %p439, %s438, 0
      %p441 = scmp.lt.s32.totalorder %s440, 0
      %s442 = scalar_select %p441, %s440, 0
      %s443 = smul.addr %s442, 8
      %s444 = scalar_lea.vmem %s2, %s443
      %s445 = sadd.s32 %s23, %s24
      %p446 = scmp.lt.s32.totalorder %s445, 0
      %s447 = scalar_select %p446, %s445, 0
      %s448 = sadd.s32 %s23, %s24
      %p449 = scmp.lt.s32.totalorder %s448, 0
      %s450 = scalar_select %p449, %s448, 0
      %p451 = scmp.lt.s32.totalorder %s450, 0
      %s452 = scalar_select %p451, %s450, 0
      %s453 = smul.addr %s452, 8
      %s454 = scalar_lea.vmem %s3, %s453
      %s455 = sadd.s32 %s23, %s24
      %p456 = scmp.lt.s32.totalorder %s455, 0
      %s457 = scalar_select %p456, %s455, 0
      %s458 = sadd.s32 %s23, %s24
      %p459 = scmp.lt.s32.totalorder %s458, 0
      %s460 = scalar_select %p459, %s458, 0
      %p461 = scmp.lt.s32.totalorder %s460, 0
      %s462 = scalar_select %p461, %s460, 0
      %s463 = smul.addr %s462, 8
      %s464 = scalar_lea.vmem %s4, %s463
      %s465 = sadd.s32 %s23, %s24
      %p466 = scmp.lt.s32.totalorder %s465, 0
      %s467 = scalar_select %p466, %s465, 0
      %p468 = scmp.lt.s32.totalorder %s23, 1
      %s469 = scalar_select %p468, %s23, 1
      %s470 = smul.addr %s469, 8
      %s471 = scalar_lea.vmem %s5, %s470
      %p472 = scmp.lt.s32.totalorder %s23, 1
      %s473 = scalar_select %p472, %s23, 1
      %s474 = smul.addr %s473, 8
      %s475 = scalar_lea.vmem %s6, %s474
      %p476 = scmp.lt.s32.totalorder %s23, 1
      %s477 = scalar_select %p476, %s23, 1
      %s478 = smul.addr %s477, 8
      %s479 = scalar_lea.vmem %s7, %s478
      %p480 = scmp.eq.s32.totalorder %s24, 0
      // Predicated region
      $region41: #{distillation_loss.1} parent=39 // pred_check
        %p481 = pneg %p480
      $region42: #{distillation_loss.1} parent=39 // pred_check_branch
        %483 = sbr.rel (%p481) target = $region44
      $region43: #{distillation_loss.1} parent=39 // pred_region
        %484 = vst [vmem:[%s471] sm:$0xff] 0.0
        %485 = vst [vmem:[%s475] sm:$0xff] 0.0
        %486 = vst [vmem:[%s479] sm:$0xff] 0.0
      $region44: #{distillation_loss.1} parent=39 // pred_fallthru
        _
      %v487 = vld [vmem:[%s424] sm:$0xff]
      %v488 = vld [vmem:[%s434] sm:$0xff]
      %v489 = vld [vmem:[%s444] sm:$0xff]
      %v490 = vsub.f32 %v487, %v488
      %v491 = vsub.f32 %v487, %v489
      %v492 = vmul.f32 %v490, %v490
      %v493 = vmul.f32 %v491, %v491
      %s494 = sadd.s32 %s23, %s24
      %s495 = smul.u32 %s494, 8
      %v496 = vlaneseq
      %v497 = vshrl.u32 %v496, 7
      %v498 = vstv %s495
      %v499 = vadd.s32 %v498, %v497
      %p500 = scmp.lt.s32.totalorder %s24, 1
      %s501 = scalar_select %p500, 8, 0
      %v502 = vstv %s501
      %vm503 = vcmp.lt.s32.totalorder %v499, %v502
      %v504 = vsel %vm503, %v492, 0.0
      %v505 = vsel %vm503, %v493, 0.0
      %v506 = vld [vmem:[%s471] sm:$0xff]
      %v507 = vadd.f32 %v504, 0.0
      %v508 = vadd.f32 %v506, %v507
      %509 = vst [vmem:[%s471] sm:$0xff] %v508
      %v510 = vld [vmem:[%s475] sm:$0xff]
      %v511 = vadd.f32 %v505, 0.0
      %v512 = vadd.f32 %v510, %v511
      %513 = vst [vmem:[%s475] sm:$0xff] %v512
      %v514 = vld [vmem:[%s454] sm:$0xff]
      %v515 = vld [vmem:[%s464] sm:$0xff]
      %v516 = vsub.f32 %v514, %v515
      %v517 = vmul.f32 %v516, %v516
      %v518 = vsel %vm503, %v517, 0.0
      %v519 = vld [vmem:[%s479] sm:$0xff]
      %v520 = vadd.f32 %v518, 0.0
      %v521 = vadd.f32 %v519, %v520
      %522 = vst [vmem:[%s479] sm:$0xff] %v521
      %p523 = scmp.lt.s32.totalorder %s23, 1
      %s524 = scalar_select %p523, %s23, 1
      %s525 = smul.addr %s524, 8
      %s526 = scalar_lea.vmem %s5, %s525
      %p527 = scmp.lt.s32.totalorder %s23, 1
      %s528 = scalar_select %p527, %s23, 1
      %s529 = smul.addr %s528, 8
      %s530 = scalar_lea.vmem %s6, %s529
      %p531 = scmp.lt.s32.totalorder %s23, 1
      %s532 = scalar_select %p531, %s23, 1
      %s533 = smul.addr %s532, 8
      %s534 = scalar_lea.vmem %s7, %s533
      // Predicated region
      $region45: #{distillation_loss.1} parent=39 // pred_check
        %p535 = pneg %p209
      $region46: #{distillation_loss.1} parent=39 // pred_check_branch
        %537 = sbr.rel (%p535) target = $region48
      $region47: #{distillation_loss.1} parent=39 // pred_region
        _
      $region48: #{distillation_loss.1} parent=39 // pred_fallthru
        _
      // Predicated region
      $region49: #{distillation_loss.1} parent=39 // pred_check
        %p538 = pneg %p235
      $region50: #{distillation_loss.1} parent=39 // pred_check_branch
        %540 = sbr.rel (%p538) target = $region52
      $region51: #{distillation_loss.1} parent=39 // pred_region
        _
      $region52: #{distillation_loss.1} parent=39 // pred_fallthru
        _
      // Predicated region
      $region53: #{distillation_loss.1} parent=39 // pred_check
        %p541 = pneg %p261
      $region54: #{distillation_loss.1} parent=39 // pred_check_branch
        %543 = sbr.rel (%p541) target = $region56
      $region55: #{distillation_loss.1} parent=39 // pred_region
        _
      $region56: #{distillation_loss.1} parent=39 // pred_fallthru
        _
    $region40: #{distillation_loss.1} parent=5 // pred_fallthru
      _
    %p544 = scmp.le.s32.totalorder 2, %s14
    // Predicated region
    $region57: #{distillation_loss.1} parent=5 // pred_check
      %p545 = pneg %p544
    $region58: #{distillation_loss.1} parent=5 // pred_check_branch
      %547 = sbr.rel (%p545) target = $region60
    $region59: #{distillation_loss.1} parent=5 // pred_region
      %s548 = ssub.s32 %s14, 2
      // Predicated region
      $region61: #{distillation_loss.1} parent=59 // pred_check
        %p549 = pneg %p215
      $region62: #{distillation_loss.1} parent=59 // pred_check_branch
        %551 = sbr.rel (%p549) target = $region64
      $region63: #{distillation_loss.1} parent=59 // pred_region
        %p552 = scmp.lt.s32.totalorder %s25, 1
        %s553 = scalar_select %p552, %s25, 1
        %s554 = smul.addr %s553, 8
        %s555 = scalar_lea.vmem %s5, %s554
      $region64: #{distillation_loss.1} parent=59 // pred_fallthru
        _
      // Predicated region
      $region65: #{distillation_loss.1} parent=59 // pred_check
        %p556 = pneg %p241
      $region66: #{distillation_loss.1} parent=59 // pred_check_branch
        %558 = sbr.rel (%p556) target = $region68
      $region67: #{distillation_loss.1} parent=59 // pred_region
        %p559 = scmp.lt.s32.totalorder %s25, 1
        %s560 = scalar_select %p559, %s25, 1
        %s561 = smul.addr %s560, 8
        %s562 = scalar_lea.vmem %s6, %s561
      $region68: #{distillation_loss.1} parent=59 // pred_fallthru
        _
      // Predicated region
      $region69: #{distillation_loss.1} parent=59 // pred_check
        %p563 = pneg %p267
      $region70: #{distillation_loss.1} parent=59 // pred_check_branch
        %565 = sbr.rel (%p563) target = $region72
      $region71: #{distillation_loss.1} parent=59 // pred_region
        %p566 = scmp.lt.s32.totalorder %s25, 1
        %s567 = scalar_select %p566, %s25, 1
        %s568 = smul.addr %s567, 8
        %s569 = scalar_lea.vmem %s7, %s568
      $region72: #{distillation_loss.1} parent=59 // pred_fallthru
        _
    $region60: #{distillation_loss.1} parent=5 // pred_fallthru
      _
  $region6: #{distillation_loss.1} parent=0 // loop_footer
    %s18 = sadd.s32 1, %s14
  $region7: #{distillation_loss.1} parent=0 // loop_footer_branch
    %13 = sbr.rel target = $region3
  $region8: #{distillation_loss.1} parent=0 // loop_exit
    _

</llo_original>
